<compile_context>
chip_gen: v7x
topology: tpu7x:2x2x1
jax: 0.10.0
libtpu: 0.0.40
codegen_flags: <defaults>
</compile_context>

<pallas_src>
import functools
import math

import jax
import jax.numpy as jnp
from jax.experimental import pallas as pl
from jax.experimental.pallas import tpu as pltpu

_SIGMA = 1.0


def _gaussian_taps_1d(sigma: float = _SIGMA):
    """Normalized symmetric 1-D 3-tap Gaussian: returns (edge, center)."""
    v = [math.exp(-(i * i) / (2.0 * sigma * sigma)) for i in (-1, 0, 1)]
    s = sum(v)
    return v[0] / s, v[1] / s


def _planes_per_block(nc: int, hw: int) -> int:
    """Planes per grid step; ~4 MiB f32 blocks, sublane-aligned partial blocks."""
    max_p = max(1, (4 * 1024 * 1024) // (4 * hw))
    if nc <= max_p:
        return nc                      # full extent -> always a legal block dim
    return max(8, (max_p // 8) * 8)    # multiple of 8 -> legal partial blocks


def _blur_kernel(x_ref, o_ref, *, W, HW, w0, w1):
    # x_ref/o_ref: VMEM (P, H*W); each sublane row is one flattened image plane.
    x = x_ref[...].astype(jnp.float32)
    lane = jax.lax.broadcasted_iota(jnp.int32, x.shape, 1)
    col = lane % W                                   # column index within a row

    # Horizontal 3-tap (lane rotations by +-1), zero padding at row edges.
    xl = jnp.where(col == 0, 0.0, pltpu.roll(x, shift=1, axis=1))
    xr = jnp.where(col == W - 1, 0.0, pltpu.roll(x, shift=HW - 1, axis=1))
    h = w1 * x + w0 * (xl + xr)

    # Vertical 3-tap (lane rotations by +-W), zero padding at top/bottom rows.
    hu = jnp.where(lane < W, 0.0, pltpu.roll(h, shift=W, axis=1))
    hd = jnp.where(lane >= HW - W, 0.0, pltpu.roll(h, shift=HW - W, axis=1))
    o_ref[...] = (w1 * h + w0 * (hu + hd)).astype(o_ref.dtype)


def _gaussian_blur_3x3(x):
    """Depthwise 3x3 Gaussian blur (zero padding) of an NCHW tensor."""
    N, C, H, W = x.shape
    nc, hw = N * C, H * W
    x2 = x.reshape(nc, hw)                           # free reshape, no data move
    pb = _planes_per_block(nc, hw)
    w0, w1 = _gaussian_taps_1d()

    kernel = functools.partial(_blur_kernel, W=W, HW=hw, w0=w0, w1=w1)
    out = pl.pallas_call(
        kernel,
        out_shape=jax.ShapeDtypeStruct((nc, hw), x.dtype),
        grid_spec=pltpu.PrefetchScalarGridSpec(
            num_scalar_prefetch=0,
            grid=(pl.cdiv(nc, pb),),
            in_specs=[pl.BlockSpec((pb, hw), lambda i: (i, 0))],
            out_specs=pl.BlockSpec((pb, hw), lambda i: (i, 0)),
        ),
        compiler_params=pltpu.CompilerParams(
            dimension_semantics=("parallel",),
        ),
    )(x2)
    return out.reshape(N, C, H, W)


def random_apply_gaussian_blur(x, key, p):
    """RandomApply(fn=GaussianBlur3x3, p=p) forward pass.

    PyTorch semantics: `if random.random() > p: return x; return fn(x)`,
    i.e. apply fn with probability p.  The identity branch performs no kernel
    launch and no HBM traffic thanks to lax.cond.
    """
    u = jax.random.uniform(key, ())
    return jax.lax.cond(u <= p, _gaussian_blur_3x3, lambda t: t, x)


if __name__ == "__main__":
    key = jax.random.PRNGKey(0)
    k_x, k_rand = jax.random.split(key)

    # Small NCHW input consistent with an image batch: (N=2, C=4, H=16, W=16)
    x = jax.random.normal(k_x, (2, 4, 16, 16), dtype=jnp.float32)
    p = 0.8

    out = jax.jit(random_apply_gaussian_blur)(x, k_rand, p)
    jax.block_until_ready(out)
    assert out.shape == x.shape and out.dtype == x.dtype

    # Sanity check against a pure-JAX reference of the same forward pass.
    w0, w1 = _gaussian_taps_1d()
    taps = [w0, w1, w0]
    H, W = x.shape[2], x.shape[3]
    xp = jnp.pad(x, ((0, 0), (0, 0), (1, 1), (1, 1)))
    ref_blur = sum(
        taps[di] * taps[dj] * xp[:, :, di:di + H, dj:dj + W]
        for di in range(3) for dj in range(3)
    )
    expect_apply = bool(jax.random.uniform(k_rand, ()) <= p)
    ref = ref_blur if expect_apply else x
    assert jnp.allclose(out, ref, atol=1e-5, rtol=1e-5)

    print("KERNEL_OK")
</pallas_src>

<mosaic_0001>
module attributes {stable_mosaic.version = 11 : i64} {
  func.func @_blur_kernel(%arg0: i32, %arg1: memref<8x256xf32, #tpu.memory_space<vmem>>, %arg2: memref<8x256xf32, #tpu.memory_space<vmem>>) attributes {dimension_semantics = [#tpu.dimension_semantics<parallel>], iteration_bounds = array<i64: 1>, scalar_prefetch = 0 : i64, scratch_operands = 0 : i64, tpu.core_type = #tpu.core_type<tc>, window_params = [{transform_indices = @transform_0, window_bounds = array<i64: 8, 256>}, {transform_indices = @transform_1, window_bounds = array<i64: 8, 256>}]} {
    %c0 = arith.constant 0 : index
    %c0_0 = arith.constant 0 : index
    %0 = vector.load %arg1[%c0, %c0_0] : memref<8x256xf32, #tpu.memory_space<vmem>>, vector<8x256xf32>
    %1 = tpu.iota {dimensions = array<i32: 1>} : vector<8x256xi32>
    %c16_i32 = arith.constant 16 : i32
    %c0_i32 = arith.constant 0 : i32
    %2 = arith.cmpi eq, %c16_i32, %c0_i32 : i32
    %c1_i32 = arith.constant 1 : i32
    %3 = arith.select %2, %c1_i32, %c16_i32 : i32
    %4 = vector.broadcast %3 : i32 to vector<8x256xi32>
    %5 = arith.remsi %1, %4 : vector<8x256xi32>
    %c0_i32_1 = arith.constant 0 : i32
    %6 = vector.broadcast %c0_i32_1 : i32 to vector<8x256xi32>
    %7 = arith.cmpi ne, %5, %6 : vector<8x256xi32>
    %c0_i32_2 = arith.constant 0 : i32
    %8 = vector.broadcast %c0_i32_2 : i32 to vector<8x256xi32>
    %9 = arith.cmpi slt, %5, %8 : vector<8x256xi32>
    %c0_i32_3 = arith.constant 0 : i32
    %10 = arith.cmpi slt, %3, %c0_i32_3 : i32
    %11 = vector.broadcast %10 : i1 to vector<8x256xi1>
    %12 = vector.broadcast %11 : vector<8x256xi1> to vector<8x256xi1>
    %13 = arith.xori %9, %12 : vector<8x256xi1>
    %14 = arith.andi %13, %7 : vector<8x256xi1>
    %15 = vector.broadcast %3 : i32 to vector<8x256xi32>
    %16 = arith.addi %5, %15 : vector<8x256xi32>
    %17 = arith.select %14, %16, %5 : vector<8x256xi1>, vector<8x256xi32>
    %c0_i32_4 = arith.constant 0 : i32
    %18 = vector.broadcast %c0_i32_4 : i32 to vector<8x256xi32>
    %19 = arith.cmpi eq, %17, %18 : vector<8x256xi32>
    %c1_i32_5 = arith.constant 1 : i32
    %20 = tpu.dynamic_rotate %0 by %c1_i32_5 dim 1 : vector<8x256xf32>, i32 -> vector<8x256xf32>
    %cst = arith.constant 0.000000e+00 : f32
    %21 = vector.broadcast %cst : f32 to vector<8x256xf32>
    %22 = arith.select %19, %21, %20 : vector<8x256xi1>, vector<8x256xf32>
    %c15_i32 = arith.constant 15 : i32
    %23 = vector.broadcast %c15_i32 : i32 to vector<8x256xi32>
    %24 = arith.cmpi eq, %17, %23 : vector<8x256xi32>
    %c255_i32 = arith.constant 255 : i32
    %25 = tpu.dynamic_rotate %0 by %c255_i32 dim 1 : vector<8x256xf32>, i32 -> vector<8x256xf32>
    %cst_6 = arith.constant 0.000000e+00 : f32
    %26 = vector.broadcast %cst_6 : f32 to vector<8x256xf32>
    %27 = arith.select %24, %26, %25 : vector<8x256xi1>, vector<8x256xf32>
    %cst_7 = arith.constant 0.451862752 : f32
    %28 = vector.broadcast %cst_7 : f32 to vector<8x256xf32>
    %29 = arith.mulf %28, %0 : vector<8x256xf32>
    %30 = arith.addf %22, %27 : vector<8x256xf32>
    %cst_8 = arith.constant 0.274068624 : f32
    %31 = vector.broadcast %cst_8 : f32 to vector<8x256xf32>
    %32 = arith.mulf %31, %30 : vector<8x256xf32>
    %33 = arith.addf %29, %32 : vector<8x256xf32>
    %c16_i32_9 = arith.constant 16 : i32
    %34 = vector.broadcast %c16_i32_9 : i32 to vector<8x256xi32>
    %35 = arith.cmpi slt, %1, %34 : vector<8x256xi32>
    %c16_i32_10 = arith.constant 16 : i32
    %36 = tpu.dynamic_rotate %33 by %c16_i32_10 dim 1 : vector<8x256xf32>, i32 -> vector<8x256xf32>
    %cst_11 = arith.constant 0.000000e+00 : f32
    %37 = vector.broadcast %cst_11 : f32 to vector<8x256xf32>
    %38 = arith.select %35, %37, %36 : vector<8x256xi1>, vector<8x256xf32>
    %c240_i32 = arith.constant 240 : i32
    %39 = vector.broadcast %c240_i32 : i32 to vector<8x256xi32>
    %40 = arith.cmpi sge, %1, %39 : vector<8x256xi32>
    %c240_i32_12 = arith.constant 240 : i32
    %41 = tpu.dynamic_rotate %33 by %c240_i32_12 dim 1 : vector<8x256xf32>, i32 -> vector<8x256xf32>
    %cst_13 = arith.constant 0.000000e+00 : f32
    %42 = vector.broadcast %cst_13 : f32 to vector<8x256xf32>
    %43 = arith.select %40, %42, %41 : vector<8x256xi1>, vector<8x256xf32>
    %cst_14 = arith.constant 0.451862752 : f32
    %44 = vector.broadcast %cst_14 : f32 to vector<8x256xf32>
    %45 = arith.mulf %44, %33 : vector<8x256xf32>
    %46 = arith.addf %38, %43 : vector<8x256xf32>
    %cst_15 = arith.constant 0.274068624 : f32
    %47 = vector.broadcast %cst_15 : f32 to vector<8x256xf32>
    %48 = arith.mulf %47, %46 : vector<8x256xf32>
    %49 = arith.addf %45, %48 : vector<8x256xf32>
    %c0_16 = arith.constant 0 : index
    %c0_17 = arith.constant 0 : index
    %50 = vector.load %arg2[%c0_16, %c0_17] : memref<8x256xf32, #tpu.memory_space<vmem>>, vector<8x256xf32>
    tpu.vector_store %arg2[%c0_16, %c0_17], %49 {strides = array<i32>} : memref<8x256xf32, #tpu.memory_space<vmem>>, vector<8x256xf32>,
    return
  }
  func.func @transform_0(%arg0: i32) -> (i32, i32) {
    %c0_i32 = arith.constant 0 : i32
    %c0_i32_0 = arith.constant 0 : i32
    return %arg0, %c0_i32 : i32, i32
  }
  func.func @transform_1(%arg0: i32) -> (i32, i32) {
    %c0_i32 = arith.constant 0 : i32
    %c0_i32_0 = arith.constant 0 : i32
    return %arg0, %c0_i32 : i32, i32
  }
}

</mosaic_0001>

<llo_original>
// kernel: branch_1_fun.1
$region0: #{branch_1_fun.1}
  #allocation0 [shape = 'u32[]', space=smem, size = 0x4, offset = 0x4, fixed_abs, tag = 'smem constant byte address 0x4 - core index']
  #allocation1 [shape = 'u32[144,128]{1,0:T(1,128)}', space=vmem, size = 0x12000, scoped, tag = 'internal scratch']
  %s0 = inlined_call_operand.vmem [shape: f32[8,256], index: 0, kind: input, shape index: {}]
  %s1 = inlined_call_operand.vmem [shape: f32[8,256], index: 1, kind: output, shape index: {}]
  %s2 = sld [smem:[#allocation0]]
  $region14: #{branch_1_fun.1} parent=0
    _
  %s4 = ssub.s32 1, %s2
  %s5 = scalar_select 0, %s4, %s2
  // Predicated region
  $region2: #{branch_1_fun.1} parent=0 // pred_check
    _
  $region3: #{branch_1_fun.1} parent=0 // pred_check_branch
    %7 = sbr.rel (0) target = $region5
  $region4: #{branch_1_fun.1} parent=0 // pred_region
    _
  $region5: #{branch_1_fun.1} parent=0 // pred_fallthru
    _
  %v8 = vld [vmem:[%s0] sm:$0xff]
  %v9 = vld [vmem:[%s0 + $0x8] sm:$0xff]
  %v10 = vlaneseq
  %v11 = vand.u32 %v10, 127
  %v12 = vadd.s32 %v11, 128
  %vm13 = vcmp.lt.s32.totalorder %v11, 0
  %v14 = vsub.s32 0, %v11
  %v15 = vsel %vm13, %v14, %v11
  %v16 = vshrl.u32 %v15, 4
  %v17 = vand.u32 %v15, 15
  %v18 = vsub.s32 0, %v17
  %v19 = vsel %vm13, %v18, %v17
  %vm20 = vcmp.lt.s32.totalorder %v12, 0
  %v21 = vsub.s32 0, %v12
  %v22 = vsel %vm20, %v21, %v12
  %v23 = vshrl.u32 %v22, 4
  %v24 = vand.u32 %v22, 15
  %v25 = vsub.s32 0, %v24
  %v26 = vsel %vm20, %v25, %v24
  %vm27 = vcmp.ne.s32.totalorder %v19, 0
  %vm28 = vcmp.ne.s32.totalorder %v26, 0
  %vm29 = vcmp.lt.s32.totalorder %v19, 0
  %vm30 = vcmp.lt.s32.totalorder %v26, 0
  %vm31 = vmand %vm29, %vm27
  %vm32 = vmand %vm30, %vm28
  %v33 = vadd.s32 %v19, 16
  %v34 = vadd.s32 %v26, 16
  %v35 = vsel %vm31, %v33, %v19
  %v36 = vsel %vm32, %v34, %v26
  %vm37 = vcmp.eq.s32.totalorder %v35, 0
  %vm38 = vcmp.eq.s32.totalorder %v36, 0
  %39 = vrot.lane.b32.xlu0 %v8, 1
  %v40 = vpop.permute.xlu0 %39
  %41 = vrot.lane.b32.xlu0 %v9, 1
  %v42 = vpop.permute.xlu0 %41
  %vm43 = vcmp.lt.s32.totalorder %v11, 1
  %v44 = vsel %vm43, %v40, %v42
  %v45 = vsel %vm43, %v42, %v40
  %v46 = vsel %vm37, 0.0, %v45
  %v47 = vsel %vm38, 0.0, %v44
  %vm48 = vcmp.eq.s32.totalorder %v35, 15
  %vm49 = vcmp.eq.s32.totalorder %v36, 15
  %50 = vrot.lane.b32.xlu0 %v8, 127
  %v51 = vpop.permute.xlu0 %50
  %52 = vrot.lane.b32.xlu0 %v9, 127
  %v53 = vpop.permute.xlu0 %52
  %vm54 = vcmp.lt.s32.totalorder %v11, 127
  %v55 = vsel %vm54, %v51, %v53
  %v56 = vsel %vm54, %v53, %v51
  %v57 = vsel %vm48, 0.0, %v55
  %v58 = vsel %vm49, 0.0, %v56
  %v59 = vmul.f32 %v8, 0.45186275
  %v60 = vmul.f32 %v9, 0.45186275
  %v61 = vadd.f32 %v46, %v57
  %v62 = vadd.f32 %v47, %v58
  %v63 = vmul.f32 %v61, 0.27406862
  %v64 = vmul.f32 %v62, 0.27406862
  %v65 = vadd.f32 %v59, %v63
  %v66 = vadd.f32 %v60, %v64
  %vm67 = vcmp.lt.s32.totalorder %v11, 16
  %vm68 = vcmp.lt.s32.totalorder %v12, 16
  %69 = vrot.lane.b32.xlu0 %v65, 16
  %v70 = vpop.permute.xlu0 %69
  %71 = vrot.lane.b32.xlu0 %v66, 16
  %v72 = vpop.permute.xlu0 %71
  %v73 = vsel %vm67, %v70, %v72
  %v74 = vsel %vm67, %v72, %v70
  %v75 = vsel %vm67, 0.0, %v74
  %v76 = vsel %vm68, 0.0, %v73
  %vm77 = vcmp.ge.s32.totalorder %v11, 240
  %vm78 = vcmp.ge.s32.totalorder %v12, 240
  %79 = vrot.lane.b32.xlu0 %v65, 112
  %v80 = vpop.permute.xlu0 %79
  %81 = vrot.lane.b32.xlu0 %v66, 112
  %v82 = vpop.permute.xlu0 %81
  %vm83 = vcmp.lt.s32.totalorder %v11, 112
  %v84 = vsel %vm83, %v80, %v82
  %v85 = vsel %vm83, %v82, %v80
  %v86 = vsel %vm77, 0.0, %v84
  %v87 = vsel %vm78, 0.0, %v85
  %v88 = vmul.f32 %v65, 0.45186275
  %v89 = vmul.f32 %v66, 0.45186275
  %v90 = vadd.f32 %v75, %v86
  %v91 = vadd.f32 %v76, %v87
  %v92 = vmul.f32 %v90, 0.27406862
  %v93 = vmul.f32 %v91, 0.27406862
  %v94 = vadd.f32 %v88, %v92
  %v95 = vadd.f32 %v89, %v93
  %96 = vst [vmem:[%s1] sm:$0xff] %v94
  %97 = vst [vmem:[%s1 + $0x8] sm:$0xff] %v95
  // Predicated region
  $region6: #{branch_1_fun.1} parent=0 // pred_check
    _
  $region7: #{branch_1_fun.1} parent=0 // pred_check_branch
    %99 = sbr.rel (0) target = $region9
  $region8: #{branch_1_fun.1} parent=0 // pred_region
    _
  $region9: #{branch_1_fun.1} parent=0 // pred_fallthru
    _
  // Predicated region
  $region10: #{branch_1_fun.1} parent=0 // pred_check
    _
  $region11: #{branch_1_fun.1} parent=0 // pred_check_branch
    %101 = sbr.rel (0) target = $region13
  $region12: #{branch_1_fun.1} parent=0 // pred_region
    _
  $region13: #{branch_1_fun.1} parent=0 // pred_fallthru
    _

</llo_original>
